<compile_context>
chip_gen: v6e
topology: v6e:2x2x1
jax: 0.10.0
libtpu: 0.0.40
codegen_flags: <defaults>
</compile_context>

<pallas_src>
import jax
import jax.numpy as jnp
from jax.experimental import pallas as pl
from jax.experimental.pallas import tpu as pltpu

LANE = 128
SUBLANE_F32 = 8


def _round_up(x, m):
    return (x + m - 1) // m * m


# ------------------------------ Pallas kernel -------------------------------

def _statnet_kernel(x_ref, w1_ref, b1_ref, w2_ref, b2_ref, w3_ref, b3_ref, o_ref):
    """Fused MLP tile: ReLU(ReLU(x@W1+b1)@W2+b2) . w3 + b3, all in VMEM."""
    # Layer 1: cast x f32->bf16 on the VPU, MXU matmul with f32 accumulation.
    x = x_ref[...].astype(jnp.bfloat16)                               # (bm, D)
    h1 = jnp.dot(x, w1_ref[...], preferred_element_type=jnp.float32) + b1_ref[...]
    h1 = jnp.maximum(h1, 0.0)                                         # (bm, Hp) f32
    # Layer 2
    h2 = jnp.dot(h1.astype(jnp.bfloat16), w2_ref[...],
                 preferred_element_type=jnp.float32) + b2_ref[...]
    h2 = jnp.maximum(h2, 0.0)                                         # (bm, Hp) f32
    # Layer 3: single output unit -> VPU multiply + lane reduction (pure f32).
    o_ref[...] = jnp.sum(h2 * w3_ref[...], axis=-1, keepdims=True) + b3_ref[...]


# ------------------------------ param packing -------------------------------

def pack_params(params):
    """One-time prep: transpose / zero-pad hidden dim to 128 / cast to bf16.

    Zero padding is exact: padded hidden units get weight 0 and bias 0, so
    ReLU(0) = 0, and the padded rows/lanes of downstream weights are 0.
    """
    H, D = params["w1"].shape                  # (100, x_dim + z_dim)
    Hp = _round_up(H, LANE)                    # 128 (do NOT pad to 256)

    def pad2(a, r, c):
        return jnp.pad(a, ((0, r - a.shape[0]), (0, c - a.shape[1])))

    return dict(
        w1=pad2(params["w1"].T, D, Hp).astype(jnp.bfloat16),           # (D, Hp)
        b1=pad2(params["b1"].reshape(1, -1), 1, Hp).astype(jnp.float32),
        w2=pad2(params["w2"].T, Hp, Hp).astype(jnp.bfloat16),          # (Hp, Hp)
        b2=pad2(params["b2"].reshape(1, -1), 1, Hp).astype(jnp.float32),
        w3=pad2(params["w3"].reshape(1, -1), 1, Hp).astype(jnp.float32),  # (1, Hp) f32
        b3=params["b3"].reshape(1, 1).astype(jnp.float32),             # (1, 1)
    )


# --------------------------------- wrapper ----------------------------------

def statistics_network_forward(x, packed, *, block_m=1024):
    """x: (B, x_dim + z_dim) float32, packed = pack_params(...). Returns (B, 1)."""
    B, D = x.shape
    Hp = packed["w1"].shape[1]
    assert packed["w1"].shape[0] == D, "packed params do not match x's feature dim"

    bm = min(block_m, _round_up(B, SUBLANE_F32))
    grid_m = pl.cdiv(B, bm)                    # partial tail block masked by Pallas

    return pl.pallas_call(
        _statnet_kernel,
        out_shape=jax.ShapeDtypeStruct((B, 1), jnp.float32),
        grid=(grid_m,),
        in_specs=[
            pl.BlockSpec((bm, D), lambda i: (i, 0)),    # x tile (f32, streams over B)
            pl.BlockSpec((D, Hp), lambda i: (0, 0)),    # W1 bf16 (resident)
            pl.BlockSpec((1, Hp), lambda i: (0, 0)),    # b1 f32
            pl.BlockSpec((Hp, Hp), lambda i: (0, 0)),   # W2 bf16
            pl.BlockSpec((1, Hp), lambda i: (0, 0)),    # b2 f32
            pl.BlockSpec((1, Hp), lambda i: (0, 0)),    # w3 row f32
            pl.BlockSpec((1, 1), lambda i: (0, 0)),     # b3 f32
        ],
        out_specs=pl.BlockSpec((bm, 1), lambda i: (i, 0)),
        compiler_params=pltpu.CompilerParams(
            dimension_semantics=("parallel",)),
    )(x, packed["w1"], packed["b1"], packed["w2"], packed["b2"],
      packed["w3"], packed["b3"])


# ------------------------- parameters / reference ---------------------------

def init_params(x_dim, z_dim, seed=0):
    """PyTorch nn.Linear default init: U(-1/sqrt(fan_in), 1/sqrt(fan_in))."""
    key = jax.random.PRNGKey(seed)

    def linear(key, out_f, in_f):
        kw, kb = jax.random.split(key)
        bound = 1.0 / jnp.sqrt(in_f)
        w = jax.random.uniform(kw, (out_f, in_f), jnp.float32, -bound, bound)
        b = jax.random.uniform(kb, (out_f,), jnp.float32, -bound, bound)
        return w, b

    k1, k2, k3 = jax.random.split(key, 3)
    w1, b1 = linear(k1, 100, x_dim + z_dim)
    w2, b2 = linear(k2, 100, 100)
    w3, b3 = linear(k3, 1, 100)
    return dict(w1=w1, b1=b1, w2=w2, b2=b2, w3=w3, b3=b3)


def reference_forward(x, p):
    h = jnp.maximum(x @ p["w1"].T + p["b1"], 0.0)
    h = jnp.maximum(h @ p["w2"].T + p["b2"], 0.0)
    return h @ p["w3"].T + p["b3"]


# ----------------------------------- main ------------------------------------

if __name__ == "__main__":
    x_dim, z_dim, batch = 32, 32, 8

    key = jax.random.PRNGKey(0)
    x = jax.random.normal(key, (batch, x_dim + z_dim), dtype=jnp.float32)

    params = init_params(x_dim, z_dim, seed=0)
    packed = pack_params(params)           # one-time prep, outside the hot path

    out = statistics_network_forward(x, packed)
    out = jax.block_until_ready(out)

    # sanity check vs. pure-JAX reference (bf16 matmul operands -> loose tol)
    ref = reference_forward(x, params)
    max_err = float(jnp.max(jnp.abs(out - ref)))
    if out.shape != (batch, 1) or max_err > 5e-2:
        raise RuntimeError(f"mismatch: shape={out.shape} max_err={max_err}")

    print("KERNEL_OK")
</pallas_src>

<mosaic_0001>
module attributes {stable_mosaic.version = 11 : i64} {
  func.func @_statnet_kernel(%arg0: i32, %arg1: memref<8x64xf32, #tpu.memory_space<vmem>>, %arg2: memref<64x128xbf16, #tpu.memory_space<vmem>>, %arg3: memref<1x128xf32, #tpu.memory_space<vmem>>, %arg4: memref<128x128xbf16, #tpu.memory_space<vmem>>, %arg5: memref<1x128xf32, #tpu.memory_space<vmem>>, %arg6: memref<1x128xf32, #tpu.memory_space<vmem>>, %arg7: memref<1x1xf32, #tpu.memory_space<vmem>>, %arg8: memref<8x1xf32, #tpu.memory_space<vmem>>) attributes {dimension_semantics = [#tpu.dimension_semantics<parallel>], iteration_bounds = array<i64: 1>, scalar_prefetch = 0 : i64, scratch_operands = 0 : i64, tpu.core_type = #tpu.core_type<tc>, window_params = [{transform_indices = @transform_0, window_bounds = array<i64: 8, 64>}, {pipeline_mode = #tpu.pipeline_mode<synchronous>, transform_indices = @transform_1, window_bounds = array<i64: 64, 128>}, {pipeline_mode = #tpu.pipeline_mode<synchronous>, transform_indices = @transform_2, window_bounds = array<i64: 1, 128>}, {pipeline_mode = #tpu.pipeline_mode<synchronous>, transform_indices = @transform_3, window_bounds = array<i64: 128, 128>}, {pipeline_mode = #tpu.pipeline_mode<synchronous>, transform_indices = @transform_4, window_bounds = array<i64: 1, 128>}, {pipeline_mode = #tpu.pipeline_mode<synchronous>, transform_indices = @transform_5, window_bounds = array<i64: 1, 128>}, {pipeline_mode = #tpu.pipeline_mode<synchronous>, transform_indices = @transform_6, window_bounds = array<i64: 1, 1>}, {transform_indices = @transform_7, window_bounds = array<i64: 8, 1>}]} {
    %c0 = arith.constant 0 : index
    %c0_0 = arith.constant 0 : index
    %0 = vector.load %arg1[%c0, %c0_0] : memref<8x64xf32, #tpu.memory_space<vmem>>, vector<8x64xf32>
    %1 = arith.truncf %0 : vector<8x64xf32> to vector<8x64xbf16>
    %c0_1 = arith.constant 0 : index
    %c0_2 = arith.constant 0 : index
    %2 = vector.load %arg2[%c0_1, %c0_2] : memref<64x128xbf16, #tpu.memory_space<vmem>>, vector<64x128xbf16>
    %cst = arith.constant dense<0.000000e+00> : vector<8x128xf32>
    %3 = tpu.matmul %1, %2, %cst {dimension_numbers = #tpu.dot_dimension_numbers<[1], [0], [0], [1], [0, 0, 1, 1], [], []>} : vector<8x64xbf16>, vector<64x128xbf16>, vector<8x128xf32> -> vector<8x128xf32>
    %c0_3 = arith.constant 0 : index
    %c0_4 = arith.constant 0 : index
    %4 = vector.load %arg3[%c0_3, %c0_4] : memref<1x128xf32, #tpu.memory_space<vmem>>, vector<1x128xf32>
    %5 = vector.broadcast %4 : vector<1x128xf32> to vector<8x128xf32>
    %6 = arith.addf %3, %5 : vector<8x128xf32>
    %cst_5 = arith.constant 0.000000e+00 : f32
    %7 = vector.broadcast %cst_5 : f32 to vector<8x128xf32>
    %8 = arith.maximumf %6, %7 : vector<8x128xf32>
    %9 = arith.truncf %8 : vector<8x128xf32> to vector<8x128xbf16>
    %c0_6 = arith.constant 0 : index
    %c0_7 = arith.constant 0 : index
    %10 = vector.load %arg4[%c0_6, %c0_7] : memref<128x128xbf16, #tpu.memory_space<vmem>>, vector<128x128xbf16>
    %cst_8 = arith.constant dense<0.000000e+00> : vector<8x128xf32>
    %11 = tpu.matmul %9, %10, %cst_8 {dimension_numbers = #tpu.dot_dimension_numbers<[1], [0], [0], [1], [0, 0, 1, 1], [], []>} : vector<8x128xbf16>, vector<128x128xbf16>, vector<8x128xf32> -> vector<8x128xf32>
    %c0_9 = arith.constant 0 : index
    %c0_10 = arith.constant 0 : index
    %12 = vector.load %arg5[%c0_9, %c0_10] : memref<1x128xf32, #tpu.memory_space<vmem>>, vector<1x128xf32>
    %13 = vector.broadcast %12 : vector<1x128xf32> to vector<8x128xf32>
    %14 = arith.addf %11, %13 : vector<8x128xf32>
    %cst_11 = arith.constant 0.000000e+00 : f32
    %15 = vector.broadcast %cst_11 : f32 to vector<8x128xf32>
    %16 = arith.maximumf %14, %15 : vector<8x128xf32>
    %c0_12 = arith.constant 0 : index
    %c0_13 = arith.constant 0 : index
    %17 = vector.load %arg6[%c0_12, %c0_13] : memref<1x128xf32, #tpu.memory_space<vmem>>, vector<1x128xf32>
    %18 = vector.broadcast %17 : vector<1x128xf32> to vector<8x128xf32>
    %19 = arith.mulf %16, %18 : vector<8x128xf32>
    %cst_14 = arith.constant dense<0.000000e+00> : vector<8xf32>
    %20 = vector.multi_reduction <add>, %19, %cst_14 [1] : vector<8x128xf32> to vector<8xf32>
    %21 = vector.shape_cast %20 : vector<8xf32> to vector<8x1xf32>
    %c0_15 = arith.constant 0 : index
    %c0_16 = arith.constant 0 : index
    %22 = vector.load %arg7[%c0_15, %c0_16] : memref<1x1xf32, #tpu.memory_space<vmem>>, vector<1x1xf32>
    %23 = vector.broadcast %22 : vector<1x1xf32> to vector<8x1xf32>
    %24 = arith.addf %21, %23 : vector<8x1xf32>
    %c0_17 = arith.constant 0 : index
    %c0_18 = arith.constant 0 : index
    %25 = vector.load %arg8[%c0_17, %c0_18] : memref<8x1xf32, #tpu.memory_space<vmem>>, vector<8x1xf32>
    tpu.vector_store %arg8[%c0_17, %c0_18], %24 {strides = array<i32>} : memref<8x1xf32, #tpu.memory_space<vmem>>, vector<8x1xf32>,
    return
  }
  func.func @transform_0(%arg0: i32) -> (i32, i32) {
    %c0_i32 = arith.constant 0 : i32
    %c0_i32_0 = arith.constant 0 : i32
    return %arg0, %c0_i32 : i32, i32
  }
  func.func @transform_1(%arg0: i32) -> (i32, i32) {
    %c0_i32 = arith.constant 0 : i32
    %c0_i32_0 = arith.constant 0 : i32
    %c0_i32_1 = arith.constant 0 : i32
    return %c0_i32, %c0_i32_0 : i32, i32
  }
  func.func @transform_2(%arg0: i32) -> (i32, i32) {
    %c0_i32 = arith.constant 0 : i32
    %c0_i32_0 = arith.constant 0 : i32
    %c0_i32_1 = arith.constant 0 : i32
    return %c0_i32, %c0_i32_0 : i32, i32
  }
  func.func @transform_3(%arg0: i32) -> (i32, i32) {
    %c0_i32 = arith.constant 0 : i32
    %c0_i32_0 = arith.constant 0 : i32
    %c0_i32_1 = arith.constant 0 : i32
    return %c0_i32, %c0_i32_0 : i32, i32
  }
  func.func @transform_4(%arg0: i32) -> (i32, i32) {
    %c0_i32 = arith.constant 0 : i32
    %c0_i32_0 = arith.constant 0 : i32
    %c0_i32_1 = arith.constant 0 : i32
    return %c0_i32, %c0_i32_0 : i32, i32
  }
  func.func @transform_5(%arg0: i32) -> (i32, i32) {
    %c0_i32 = arith.constant 0 : i32
    %c0_i32_0 = arith.constant 0 : i32
    %c0_i32_1 = arith.constant 0 : i32
    return %c0_i32, %c0_i32_0 : i32, i32
  }
  func.func @transform_6(%arg0: i32) -> (i32, i32) {
    %c0_i32 = arith.constant 0 : i32
    %c0_i32_0 = arith.constant 0 : i32
    %c0_i32_1 = arith.constant 0 : i32
    return %c0_i32, %c0_i32_0 : i32, i32
  }
  func.func @transform_7(%arg0: i32) -> (i32, i32) {
    %c0_i32 = arith.constant 0 : i32
    %c0_i32_0 = arith.constant 0 : i32
    return %arg0, %c0_i32 : i32, i32
  }
}

</mosaic_0001>

<llo_original>
// kernel: tpu_custom_call.1
$region0: #{tpu_custom_call.1}
  #allocation0 [shape = 'u32[]', space=smem, size = 0x4, offset = 0x4, fixed_abs, tag = 'smem constant byte address 0x4 - core index']
  #allocation1 [shape = 'u32[144,128]{1,0:T(1,128)}', space=vmem, size = 0x12000, scoped, tag = 'internal scratch']
  #allocation2 [shape = 'f32[1,1]{1,0:T(1,128)S(1)}', space=vmem, size = 0x200, scoped, tag = 'scoped memory for tpu_custom_call.1']
  %s0 = inlined_call_operand.hbm [shape: f32[8,64], index: 0, kind: input, shape index: {}]
  %s1 = inlined_call_operand.hbm [shape: bf16[64,128], index: 1, kind: input, shape index: {}]
  %s2 = inlined_call_operand.vmem [shape: f32[1,128], index: 2, kind: input, shape index: {}]
  %s3 = inlined_call_operand.hbm [shape: bf16[128,128], index: 3, kind: input, shape index: {}]
  %s4 = inlined_call_operand.vmem [shape: f32[1,128], index: 4, kind: input, shape index: {}]
  %s5 = inlined_call_operand.vmem [shape: f32[1,128], index: 5, kind: input, shape index: {}]
  %s6 = inlined_call_operand.<no memory space> [shape: f32[1,1], index: 6, kind: input, shape index: {}]
  %s7 = inlined_call_operand.vmem [shape: f32[8,1], index: 7, kind: output, shape index: {}]
  %s8 = sld [smem:[#allocation0]]
  $region50: #{tpu_custom_call.1} parent=0
    _
  %s10 = ssub.s32 1, %s8
  %s11 = scalar_select 0, %s10, %s8
  %v12 = vstv %s6
  %13 = vst [vmem:[#allocation2] sm:$0x1] %v12
  $region1: #{tpu_custom_call.1} parent=0
    #allocation3 [shape = 'u8[4096]{0}', space=vmem, size = 0x1000, scoped, tag = 'input window, operand 0, single buffered']
    #allocation4 [shape = 's32[1]{0}', space=sflag, size = 0x4, scoped, tag = 'scoped memory for tpu_custom_call.1']
    #allocation5 [shape = 'u8[16384]{0}', space=vmem, size = 0x4000, scoped, tag = 'input window, operand 1, single buffered']
    #allocation6 [shape = 's32[1]{0}', space=sflag, size = 0x4, scoped, tag = 'scoped memory for tpu_custom_call.1']
    #allocation7 [shape = 'u8[32768]{0}', space=vmem, size = 0x8000, scoped, tag = 'input window, operand 3, single buffered']
    %14 = vsyncpa [#allocation4], 0
    %15 = vsyncpa [#allocation6], 0
    // Predicated region
    $region2: #{tpu_custom_call.1} parent=1 // pred_check
      _
    $region3: #{tpu_custom_call.1} parent=1 // pred_check_branch
      %17 = sbr.rel (0) target = $region5
    $region4: #{tpu_custom_call.1} parent=1 // pred_region
      %s19 = ssub.s32 128, 128
      %20 = vsyncadd [#allocation4], %s19
      %s22 = sshll.u32 [#allocation3], 4
      %s23 = int_to_ptr.vmem [resolvable:$true] %s22
      %25 = dma.hbm_to_vmem [thread:$0]  %s0, 128, %s23, [#allocation4]
    $region5: #{tpu_custom_call.1} parent=1 // pred_fallthru
      _
    // Predicated region
    $region6: #{tpu_custom_call.1} parent=1 // pred_check
      _
    $region7: #{tpu_custom_call.1} parent=1 // pred_check_branch
      %27 = sbr.rel (0) target = $region9
    $region8: #{tpu_custom_call.1} parent=1 // pred_region
      %s29 = ssub.s32 512, 512
      %30 = vsyncadd [#allocation6], %s29
      %s31 = sshll.u32 [#allocation5], 4
      %s32 = int_to_ptr.vmem [resolvable:$true] %s31
      %37 = dma.hbm_to_vmem [thread:$0]  %s1, 512, %s32, [#allocation6], 64, 64, 4
    $region9: #{tpu_custom_call.1} parent=1 // pred_fallthru
      _
    // Predicated region
    $region10: #{tpu_custom_call.1} parent=1 // pred_check
      _
    $region11: #{tpu_custom_call.1} parent=1 // pred_check_branch
      %39 = sbr.rel (0) target = $region13
    $region12: #{tpu_custom_call.1} parent=1 // pred_region
      _
    $region13: #{tpu_custom_call.1} parent=1 // pred_fallthru
      _
    // Predicated region
    $region14: #{tpu_custom_call.1} parent=1 // pred_check
      _
    $region15: #{tpu_custom_call.1} parent=1 // pred_check_branch
      %41 = sbr.rel (0) target = $region17
    $region16: #{tpu_custom_call.1} parent=1 // pred_region
      %s43 = ssub.s32 1024, 1024
      %44 = vsyncadd [#allocation6], %s43
      %s45 = sshll.u32 [#allocation7], 4
      %s46 = int_to_ptr.vmem [resolvable:$true] %s45
      %51 = dma.hbm_to_vmem [thread:$0]  %s3, 1024, %s46, [#allocation6], 64, 64, 4
    $region17: #{tpu_custom_call.1} parent=1 // pred_fallthru
      _
    // Predicated region
    $region18: #{tpu_custom_call.1} parent=1 // pred_check
      _
    $region19: #{tpu_custom_call.1} parent=1 // pred_check_branch
      %53 = sbr.rel (0) target = $region21
    $region20: #{tpu_custom_call.1} parent=1 // pred_region
      _
    $region21: #{tpu_custom_call.1} parent=1 // pred_fallthru
      _
    // Predicated region
    $region22: #{tpu_custom_call.1} parent=1 // pred_check
      _
    $region23: #{tpu_custom_call.1} parent=1 // pred_check_branch
      %55 = sbr.rel (0) target = $region25
    $region24: #{tpu_custom_call.1} parent=1 // pred_region
      _
    $region25: #{tpu_custom_call.1} parent=1 // pred_fallthru
      _
    // Predicated region
    $region26: #{tpu_custom_call.1} parent=1 // pred_check
      _
    $region27: #{tpu_custom_call.1} parent=1 // pred_check_branch
      %57 = sbr.rel (0) target = $region29
    $region28: #{tpu_custom_call.1} parent=1 // pred_region
      _
    $region29: #{tpu_custom_call.1} parent=1 // pred_fallthru
      _
    // Predicated region
    $region30: #{tpu_custom_call.1} parent=1 // pred_check
      _
    $region31: #{tpu_custom_call.1} parent=1 // pred_check_branch
      %59 = sbr.rel (0) target = $region33
    $region32: #{tpu_custom_call.1} parent=1 // pred_region
      %60 = dma.done [#allocation4], 128
    $region33: #{tpu_custom_call.1} parent=1 // pred_fallthru
      _
    // Predicated region
    $region34: #{tpu_custom_call.1} parent=1 // pred_check
      _
    $region35: #{tpu_custom_call.1} parent=1 // pred_check_branch
      %62 = sbr.rel (0) target = $region37
    $region36: #{tpu_custom_call.1} parent=1 // pred_region
      %63 = dma.done [#allocation6], 512
    $region37: #{tpu_custom_call.1} parent=1 // pred_fallthru
      _
    // Predicated region
    $region38: #{tpu_custom_call.1} parent=1 // pred_check
      _
    $region39: #{tpu_custom_call.1} parent=1 // pred_check_branch
      %65 = sbr.rel (0) target = $region41
    $region40: #{tpu_custom_call.1} parent=1 // pred_region
      %66 = dma.done [#allocation6], 1024
    $region41: #{tpu_custom_call.1} parent=1 // pred_fallthru
      _
    %v68 = vld [vmem:[#allocation3] sm:$0xff]
    %v69 = vpack.c.bf16 %v68, %v68
    %v70 = vld [vmem:[#allocation5] sm:$0xf]
    %v71 = vld [vmem:[#allocation5 + $0x4] sm:$0xf]
    %v72 = vld [vmem:[#allocation5 + $0x8] sm:$0xf]
    %v73 = vld [vmem:[#allocation5 + $0xc] sm:$0xf]
    %v74 = vld [vmem:[#allocation5 + $0x10] sm:$0xf]
    %v75 = vld [vmem:[#allocation5 + $0x14] sm:$0xf]
    %v76 = vld [vmem:[#allocation5 + $0x18] sm:$0xf]
    %v77 = vld [vmem:[#allocation5 + $0x1c] sm:$0xf]
    %v78 = vld [vmem:[%s2] sm:$0x1]
    %v80 = vlaneseq
    %v81 = vshrl.u32 %v80, 7
    %v82 = vsub.s32 0, %v81
    %v83 = vrot.slane %v78, %v82
    %v93 = vunpack.c.l.b16 %v70
    %v94 = vunpack.c.l.b16 %v71
    %v95 = vunpack.c.l.b16 %v72
    %v96 = vunpack.c.l.b16 %v73
    %v97 = vunpack.c.l.b16 %v74
    %v98 = vunpack.c.l.b16 %v75
    %v99 = vunpack.c.l.b16 %v76
    %v100 = vunpack.c.l.b16 %v77
    %v101 = vpack.c.b16 %v94, %v93
    %v102 = vpack.c.b16 %v96, %v95
    %v103 = vpack.c.b16 %v98, %v97
    %v104 = vpack.c.b16 %v100, %v99
    %vm109 = vcmask 523264
    %v111 = vsel %vm109, %v69, 0
    %113 = vmatprep.subr.bf16.mxu0 0
    %114 = vmatpush1.bf16.msra.mxu0 0
    %115 = vmatprep.subr.bf16.mxu0 0
    %116 = vmatpush1.bf16.msra.mxu0 0
    %117 = vmatprep.subr.bf16.mxu0 0
    %118 = vmatpush1.bf16.msra.mxu0 0
    %119 = vmatprep.subr.bf16.mxu0 0
    %120 = vmatpush1.bf16.msra.mxu0 0
    %121 = vmatprep.subr.bf16.mxu0 0
    %122 = vmatpush1.bf16.msra.mxu0 %v104
    %123 = vmatprep.subr.bf16.mxu0 0
    %124 = vmatpush1.bf16.msra.mxu0 %v103
    %125 = vmatprep.subr.bf16.mxu0 0
    %126 = vmatpush1.bf16.msra.mxu0 %v102
    %127 = vmatprep.subr.bf16.mxu0 0
    %128 = vmatpush1.bf16.msra.mxu0 %v101
    %129 = vmatprep.subr.bf16.mxu0 0
    %130 = vmatpush2.bf16.msra.mxu0 0
    %131 = vmatprep.subr.bf16.mxu0 0
    %132 = vmatpush2.bf16.msra.mxu0 0
    %133 = vmatprep.subr.bf16.mxu0 0
    %134 = vmatpush2.bf16.msra.mxu0 0
    %135 = vmatprep.subr.bf16.mxu0 0
    %136 = vmatpush2.bf16.msra.mxu0 0
    %137 = vmatprep.subr.bf16.mxu0 0
    %138 = vmatpush2.bf16.msra.mxu0 0
    %139 = vmatprep.subr.bf16.mxu0 0
    %140 = vmatpush2.bf16.msra.mxu0 0
    %141 = vmatprep.subr.bf16.mxu0 0
    %142 = vmatpush2.bf16.msra.mxu0 0
    %143 = vmatprep.subr.bf16.mxu0 0
    %144 = vmatpush2.bf16.msra.mxu0 0
    %145 = vmatprep.mubr.bf16.mxu0 0
    %146 = vmatmul.mubr.bf16.gmra.mxu0 %v111
    %v147 = vpop.f32.mrf.mxu0
    %v148 = vadd.f32 %v83, %v147
    %v149 = vpop.f32.mrf.mxu0
    %v150 = vpop.f32.mrf.mxu0
    %v151 = vpop.f32.mrf.mxu0
    %152 = vdwg.mxu0
    %v153 = vmax.f32 %v148, 0.0
    %v154 = vpack.c.bf16 %v153, %v153
    %v155 = vld [vmem:[#allocation7] sm:$0xf]
    %v156 = vld [vmem:[#allocation7 + $0x4] sm:$0xf]
    %v157 = vld [vmem:[#allocation7 + $0x8] sm:$0xf]
    %v158 = vld [vmem:[#allocation7 + $0xc] sm:$0xf]
    %v159 = vld [vmem:[#allocation7 + $0x10] sm:$0xf]
    %v160 = vld [vmem:[#allocation7 + $0x14] sm:$0xf]
    %v161 = vld [vmem:[#allocation7 + $0x18] sm:$0xf]
    %v162 = vld [vmem:[#allocation7 + $0x1c] sm:$0xf]
    %v163 = vld [vmem:[#allocation7 + $0x20] sm:$0xf]
    %v164 = vld [vmem:[#allocation7 + $0x24] sm:$0xf]
    %v165 = vld [vmem:[#allocation7 + $0x28] sm:$0xf]
    %v166 = vld [vmem:[#allocation7 + $0x2c] sm:$0xf]
    %v167 = vld [vmem:[#allocation7 + $0x30] sm:$0xf]
    %v168 = vld [vmem:[#allocation7 + $0x34] sm:$0xf]
    %v169 = vld [vmem:[#allocation7 + $0x38] sm:$0xf]
    %v170 = vld [vmem:[#allocation7 + $0x3c] sm:$0xf]
    %v171 = vld [vmem:[%s4] sm:$0x1]
    %v173 = vlaneseq
    %v174 = vshrl.u32 %v173, 7
    %v175 = vsub.s32 0, %v174
    %v176 = vrot.slane %v171, %v175
    %v194 = vunpack.c.l.b16 %v155
    %v195 = vunpack.c.l.b16 %v156
    %v196 = vunpack.c.l.b16 %v157
    %v197 = vunpack.c.l.b16 %v158
    %v198 = vunpack.c.l.b16 %v159
    %v199 = vunpack.c.l.b16 %v160
    %v200 = vunpack.c.l.b16 %v161
    %v201 = vunpack.c.l.b16 %v162
    %v202 = vunpack.c.l.b16 %v163
    %v203 = vunpack.c.l.b16 %v164
    %v204 = vunpack.c.l.b16 %v165
    %v205 = vunpack.c.l.b16 %v166
    %v206 = vunpack.c.l.b16 %v167
    %v207 = vunpack.c.l.b16 %v168
    %v208 = vunpack.c.l.b16 %v169
    %v209 = vunpack.c.l.b16 %v170
    %v210 = vpack.c.b16 %v195, %v194
    %v211 = vpack.c.b16 %v197, %v196
    %v212 = vpack.c.b16 %v199, %v198
    %v213 = vpack.c.b16 %v201, %v200
    %v214 = vpack.c.b16 %v203, %v202
    %v215 = vpack.c.b16 %v205, %v204
    %v216 = vpack.c.b16 %v207, %v206
    %v217 = vpack.c.b16 %v209, %v208
    %226 = vmatprep.subr.bf16.mxu0 0
    %227 = vmatpush1.bf16.msra.mxu0 %v217
    %228 = vmatprep.subr.bf16.mxu0 0
    %229 = vmatpush1.bf16.msra.mxu0 %v216
    %230 = vmatprep.subr.bf16.mxu0 0
    %231 = vmatpush1.bf16.msra.mxu0 %v215
    %232 = vmatprep.subr.bf16.mxu0 0
    %233 = vmatpush1.bf16.msra.mxu0 %v214
    %234 = vmatprep.subr.bf16.mxu0 0
    %235 = vmatpush1.bf16.msra.mxu0 %v213
    %236 = vmatprep.subr.bf16.mxu0 0
    %237 = vmatpush1.bf16.msra.mxu0 %v212
    %238 = vmatprep.subr.bf16.mxu0 0
    %239 = vmatpush1.bf16.msra.mxu0 %v211
    %240 = vmatprep.subr.bf16.mxu0 0
    %241 = vmatpush1.bf16.msra.mxu0 %v210
    %242 = vmatprep.subr.bf16.mxu0 0
    %243 = vmatpush2.bf16.msra.mxu0 0
    %244 = vmatprep.subr.bf16.mxu0 0
    %245 = vmatpush2.bf16.msra.mxu0 0
    %246 = vmatprep.subr.bf16.mxu0 0
    %247 = vmatpush2.bf16.msra.mxu0 0
    %248 = vmatprep.subr.bf16.mxu0 0
    %249 = vmatpush2.bf16.msra.mxu0 0
    %250 = vmatprep.subr.bf16.mxu0 0
    %251 = vmatpush2.bf16.msra.mxu0 0
    %252 = vmatprep.subr.bf16.mxu0 0
    %253 = vmatpush2.bf16.msra.mxu0 0
    %254 = vmatprep.subr.bf16.mxu0 0
    %255 = vmatpush2.bf16.msra.mxu0 0
    %256 = vmatprep.subr.bf16.mxu0 0
    %257 = vmatpush2.bf16.msra.mxu0 0
    %258 = vmatprep.mubr.bf16.mxu0 0
    %259 = vmatmul.mubr.bf16.gmra.mxu0 %v154
    %v260 = vpop.f32.mrf.mxu0
    %v261 = vadd.f32 %v176, %v260
    %v262 = vpop.f32.mrf.mxu0
    %v263 = vpop.f32.mrf.mxu0
    %v264 = vpop.f32.mrf.mxu0
    %265 = vdwg.mxu0
    %v266 = vmax.f32 %v261, 0.0
    %v267 = vld [vmem:[%s5] sm:$0x1]
    %v269 = vlaneseq
    %v270 = vshrl.u32 %v269, 7
    %v271 = vsub.s32 0, %v270
    %v272 = vrot.slane %v267, %v271
    %v274 = vmul.f32 %v266, %v272
    %275 = vadd.xlane.f32.xlu0 %v274
    %v276 = vpop.xlane.xlu0 %275
    %v277 = vld [vmem:[#allocation2] sm:$0x1]
    %v279 = vlaneseq
    %v280 = vshrl.u32 %v279, 7
    %v281 = vsub.s32 0, %v280
    %v282 = vrot.slane %v277, %v281
    %v284 = vadd.f32 %v276, %v282
    %vm285 = vcmask 7168
    %286 = vst.msk [vmem:[%s7] sm:$0xff] %vm285, %v284
    // Predicated region
    $region42: #{tpu_custom_call.1} parent=1 // pred_check
      _
    $region43: #{tpu_custom_call.1} parent=1 // pred_check_branch
      %288 = sbr.rel (0) target = $region45
    $region44: #{tpu_custom_call.1} parent=1 // pred_region
      _
    $region45: #{tpu_custom_call.1} parent=1 // pred_fallthru
      _
    // Predicated region
    $region46: #{tpu_custom_call.1} parent=1 // pred_check
      _
    $region47: #{tpu_custom_call.1} parent=1 // pred_check_branch
      %290 = sbr.rel (0) target = $region49
    $region48: #{tpu_custom_call.1} parent=1 // pred_region
      _
    $region49: #{tpu_custom_call.1} parent=1 // pred_fallthru
      _
    %291 = vsyncpa [#allocation4], 1
    %292 = vsyncpa [#allocation6], 1

</llo_original>
